<compile_context>
chip_gen: v7x
topology: tpu7x:2x2x1
jax: 0.10.0
libtpu: 0.0.40
codegen_flags: <defaults>
</compile_context>

<pallas_src>
import functools

import jax
import jax.numpy as jnp
import numpy as np
from jax.experimental import pallas as pl
from jax.experimental.pallas import tpu as pltpu


def _round_up(v, m):
    return (v + m - 1) // m * m


def _pad2d(a, shape):
    return jnp.pad(a, [(0, s - d) for s, d in zip(shape, a.shape)])


def _vmem_limit_bytes():
    # ~75% of physical VMEM (~48 MiB v7x, ~96 MiB v5e/v6e); leaves headroom for
    # double-buffered DMAs and compiler scratch.
    try:
        cap = int(pltpu.get_tpu_info().vmem_capacity_bytes)
    except Exception:
        cap = 64 * 1024 * 1024
    return cap * 3 // 4


def _pick_tiles(n_pad, h_pad, g_pad, vmem_limit):
    """Largest (tile_n, tile_k) whose double-buffered blocks + scratch fit VMEM."""

    def fits(tn, tk):
        need = 2 * 2 * (tn * tk + tk * h_pad)      # double-buffered bf16 A, Z blocks
        need += 2 * 2 * tn * h_pad                 # double-buffered bf16 layer-1 out
        need += 2 * 2 * g_pad * tk                 # double-buffered bf16 pool block
        need += 4 * tn * h_pad                     # f32 accumulator scratch
        need += 2 * 4 * g_pad * h_pad              # partial pooled-sum out blocks
        return need <= vmem_limit

    tile_n = next(t for t in (512, 256, 128) if n_pad % t == 0)
    tile_k = 128
    for t in (4096, 2048, 1024, 512, 256, 128):
        if n_pad % t == 0 and fits(tile_n, t):
            tile_k = t
            break
    while tile_n > 128 and not fits(tile_n, tile_k):
        tile_n //= 2
    return tile_n, tile_k


def _use_fused(n_pad, h_pad, g_pad, vmem_limit):
    need = (2 * n_pad * n_pad            # A bf16
            + 2 * n_pad * h_pad          # Z1 bf16
            + 2 * h_pad * h_pad          # W2 bf16
            + 2 * g_pad * n_pad          # pool one-hot bf16
            + 4 * 4 * n_pad * h_pad      # f32 temporaries (h1, z2, h2 + slack)
            + 4 * g_pad * h_pad)         # pooled sums
    return 2 * need <= vmem_limit        # 2x headroom


# ---------------------------------------------------------------------------
# Kernels
# ---------------------------------------------------------------------------
def _gcn_layer_kernel(a_ref, z_ref, b_ref, o_ref, acc_ref):
    """relu(A @ Z + b), K-tiled over A's columns with an f32 accumulator."""
    k = pl.program_id(1)

    @pl.when(k == 0)
    def _():
        acc_ref[...] = jnp.zeros_like(acc_ref)

    acc_ref[...] += jnp.dot(a_ref[...], z_ref[...],
                            preferred_element_type=jnp.float32)

    @pl.when(k == pl.num_programs(1) - 1)
    def _():
        o_ref[...] = jnp.maximum(acc_ref[...] + b_ref[...], 0.0).astype(o_ref.dtype)


def _gcn_pool_kernel(a_ref, z_ref, b_ref, pool_ref, o_ref, acc_ref):
    """relu(A @ Z + b) fused with pooling: emits per-row-tile partial pooled sums."""
    k = pl.program_id(1)

    @pl.when(k == 0)
    def _():
        acc_ref[...] = jnp.zeros_like(acc_ref)

    acc_ref[...] += jnp.dot(a_ref[...], z_ref[...],
                            preferred_element_type=jnp.float32)

    @pl.when(k == pl.num_programs(1) - 1)
    def _():
        h = jnp.maximum(acc_ref[...] + b_ref[...], 0.0)          # (tile_n, H) f32
        part = jnp.dot(pool_ref[...], h.astype(jnp.bfloat16),
                       preferred_element_type=jnp.float32)       # (G, H) f32
        o_ref[...] = part[None]


def _fused_small_kernel(a_ref, z1_ref, b1_ref, w2_ref, b2_ref, pool_ref, o_ref):
    """Whole forward (both GCN layers + pooling) in VMEM for small graphs."""
    h1 = jnp.maximum(
        jnp.dot(a_ref[...], z1_ref[...], preferred_element_type=jnp.float32)
        + b1_ref[...], 0.0)
    z2 = jnp.dot(h1.astype(jnp.bfloat16), w2_ref[...],
                 preferred_element_type=jnp.float32)
    h2 = jnp.maximum(
        jnp.dot(a_ref[...], z2.astype(jnp.bfloat16),
                preferred_element_type=jnp.float32) + b2_ref[...], 0.0)
    o_ref[...] = jnp.dot(pool_ref[...], h2.astype(jnp.bfloat16),
                         preferred_element_type=jnp.float32)


# ---------------------------------------------------------------------------
# pallas_call wrappers
# ---------------------------------------------------------------------------
def _gcn_layer(a_hat, z, b, tile_n, tile_k, vmem_limit):
    n_pad = a_hat.shape[0]
    h_pad = z.shape[1]
    grid = (n_pad // tile_n, n_pad // tile_k)
    return pl.pallas_call(
        _gcn_layer_kernel,
        out_shape=jax.ShapeDtypeStruct((n_pad, h_pad), jnp.bfloat16),
        grid=grid,
        in_specs=[
            pl.BlockSpec((tile_n, tile_k), lambda i, k: (i, k)),   # A block
            pl.BlockSpec((tile_k, h_pad), lambda i, k: (k, 0)),    # Z block
            pl.BlockSpec((1, h_pad), lambda i, k: (0, 0)),         # bias
        ],
        out_specs=pl.BlockSpec((tile_n, h_pad), lambda i, k: (i, 0)),
        scratch_shapes=[pltpu.VMEM((tile_n, h_pad), jnp.float32)],
        compiler_params=pltpu.CompilerParams(
            dimension_semantics=("parallel", "arbitrary"),
            vmem_limit_bytes=vmem_limit),
        cost_estimate=pl.CostEstimate(
            flops=2 * n_pad * n_pad * h_pad, transcendentals=0,
            bytes_accessed=2 * (n_pad * n_pad + grid[0] * n_pad * h_pad
                                + n_pad * h_pad) + 4 * h_pad),
    )(a_hat, z, b)


def _gcn_layer_pooled(a_hat, z, b, pool_oh, tile_n, tile_k, vmem_limit):
    n_pad = a_hat.shape[0]
    h_pad = z.shape[1]
    g_pad = pool_oh.shape[0]
    grid = (n_pad // tile_n, n_pad // tile_k)
    partial = pl.pallas_call(
        _gcn_pool_kernel,
        out_shape=jax.ShapeDtypeStruct((grid[0], g_pad, h_pad), jnp.float32),
        grid=grid,
        in_specs=[
            pl.BlockSpec((tile_n, tile_k), lambda i, k: (i, k)),   # A block
            pl.BlockSpec((tile_k, h_pad), lambda i, k: (k, 0)),    # Z block
            pl.BlockSpec((1, h_pad), lambda i, k: (0, 0)),         # bias
            pl.BlockSpec((g_pad, tile_n), lambda i, k: (0, i)),    # pool one-hot cols
        ],
        out_specs=pl.BlockSpec((1, g_pad, h_pad), lambda i, k: (i, 0, 0)),
        scratch_shapes=[pltpu.VMEM((tile_n, h_pad), jnp.float32)],
        compiler_params=pltpu.CompilerParams(
            dimension_semantics=("parallel", "arbitrary"),
            vmem_limit_bytes=vmem_limit),
        cost_estimate=pl.CostEstimate(
            flops=2 * n_pad * n_pad * h_pad + 2 * g_pad * n_pad * h_pad,
            transcendentals=0,
            bytes_accessed=2 * (n_pad * n_pad + grid[0] * n_pad * h_pad
                                + g_pad * n_pad) + 4 * grid[0] * g_pad * h_pad),
    )(a_hat, z, b, pool_oh)
    # Tiny per-row-tile / per-core partial reduce outside the kernel.
    return jnp.sum(partial, axis=0)


def _forward_fused_small(a_hat, z1, b1, w2, b2, pool_oh, vmem_limit):
    n_pad = a_hat.shape[0]
    h_pad = z1.shape[1]
    g_pad = pool_oh.shape[0]
    return pl.pallas_call(
        _fused_small_kernel,
        out_shape=jax.ShapeDtypeStruct((g_pad, h_pad), jnp.float32),
        compiler_params=pltpu.CompilerParams(vmem_limit_bytes=vmem_limit),
        cost_estimate=pl.CostEstimate(
            flops=4 * n_pad * n_pad * h_pad + 2 * n_pad * h_pad * h_pad
                  + 2 * g_pad * n_pad * h_pad,
            transcendentals=0,
            bytes_accessed=2 * (n_pad * n_pad + n_pad * h_pad + h_pad * h_pad
                                + g_pad * n_pad) + 4 * g_pad * h_pad),
    )(a_hat, z1, b1, w2, b2, pool_oh)


# ---------------------------------------------------------------------------
# Glue (plain JAX)
# ---------------------------------------------------------------------------
def _gcn_normalized_adjacency(edge_index, n_nodes):
    """D^-1/2 (A + I_remaining) D^-1/2 with PyG-style add_remaining_self_loops."""
    src, dst = edge_index[0], edge_index[1]
    adj = jnp.zeros((n_nodes, n_nodes), jnp.float32)
    adj = adj.at[dst, src].add(1.0)               # src -> dst messages; duplicates sum
    row_ids = jax.lax.broadcasted_iota(jnp.int32, (n_nodes, n_nodes), 0)
    col_ids = jax.lax.broadcasted_iota(jnp.int32, (n_nodes, n_nodes), 1)
    diag_mask = row_ids == col_ids
    diag = jnp.diagonal(adj)
    # Only nodes WITHOUT an existing self-loop get one (existing loops preserved).
    add_diag = jnp.where(diag == 0.0, 1.0, 0.0)
    adj = adj + jnp.where(diag_mask, add_diag[:, None], 0.0)
    deg = jnp.sum(adj, axis=1)
    dinv_sqrt = jnp.where(deg > 0, jax.lax.rsqrt(deg), 0.0)
    return dinv_sqrt[:, None] * adj * dinv_sqrt[None, :]


@functools.partial(jax.jit, static_argnames=("num_graphs", "force_tiled"))
def dummy_gnn_forward(x, edge_index, batch, params, num_graphs, force_tiled=False):
    """x: [N, Cin] f32, edge_index: [2, E] i32 (src, dst), batch: [N] i32."""
    n_nodes, _ = x.shape
    hidden = params["w1"].shape[1]

    n_pad = _round_up(n_nodes, 128)
    h_pad = _round_up(hidden, 128)
    g_pad = _round_up(num_graphs, 8)
    vmem_limit = _vmem_limit_bytes()

    a_hat = _gcn_normalized_adjacency(edge_index, n_nodes)
    a_hat_p = _pad2d(a_hat.astype(jnp.bfloat16), (n_pad, n_pad))   # cast fused w/ pad

    w1 = params["w1"].astype(jnp.bfloat16)
    w2_p = _pad2d(params["w2"].astype(jnp.bfloat16), (h_pad, h_pad))
    b1_p = _pad2d(params["b1"], (1, h_pad)).astype(jnp.float32)
    b2_p = _pad2d(params["b2"], (1, h_pad)).astype(jnp.float32)

    # Hoisted feature transform: Z1 = X @ W1 (tiny matmul, reference associativity).
    z1 = jnp.dot(x.astype(jnp.bfloat16), w1, preferred_element_type=jnp.float32)
    z1_p = _pad2d(z1.astype(jnp.bfloat16), (n_pad, h_pad))

    pool_oh = (batch[None, :] == jnp.arange(num_graphs)[:, None]).astype(jnp.float32)
    counts = jnp.maximum(jnp.sum(pool_oh, axis=1), 1.0)                 # [G]
    pool_p = _pad2d(pool_oh, (g_pad, n_pad)).astype(jnp.bfloat16)       # exact 0/1

    # TODO(synk): training-mode dropout (random mask + 1/(1-p) scale) not emitted;
    # eval-mode dropout is the identity.  bn1/bn2 are never used in forward().
    if _use_fused(n_pad, h_pad, g_pad, vmem_limit) and not force_tiled:
        # Small graph: one pallas_call, everything VMEM-resident, no HBM round trips.
        pooled_sum = _forward_fused_small(a_hat_p, z1_p, b1_p, w2_p, b2_p,
                                          pool_p, vmem_limit)
    else:
        tile_n, tile_k = _pick_tiles(n_pad, h_pad, g_pad, vmem_limit)
        h1 = _gcn_layer(a_hat_p, z1_p, b1_p, tile_n, tile_k, vmem_limit)  # bf16
        z2 = jnp.dot(h1, w2_p, preferred_element_type=jnp.float32)        # hoisted
        z2 = z2.astype(jnp.bfloat16)
        pooled_sum = _gcn_layer_pooled(a_hat_p, z2, b2_p, pool_p,
                                       tile_n, tile_k, vmem_limit)        # [Gp, Hp]

    pooled = pooled_sum[:num_graphs, :hidden] / counts[:, None]

    # Final Linear(hidden, 1) kept outside the kernel: an N-dim-1 matmul wastes an
    # MXU pass and a [G,1] output would lower to masked partial stores.
    return jnp.dot(pooled, params["wl"]) + params["bl"]


# ---------------------------------------------------------------------------
# Reference (pure JAX, f32) and demo
# ---------------------------------------------------------------------------
def _reference_forward(x, edge_index, batch, params, num_graphs):
    a_hat = _gcn_normalized_adjacency(edge_index, x.shape[0])
    h = jnp.maximum(a_hat @ (x @ params["w1"]) + params["b1"], 0.0)
    h = jnp.maximum(a_hat @ (h @ params["w2"]) + params["b2"], 0.0)
    one_hot = (batch[None, :] == jnp.arange(num_graphs)[:, None]).astype(jnp.float32)
    pooled = (one_hot @ h) / jnp.maximum(one_hot.sum(axis=1, keepdims=True), 1.0)
    return pooled @ params["wl"] + params["bl"]


def init_params(key, in_channels, hidden_channels):
    k1, k2, k3 = jax.random.split(key, 3)

    def glorot(k, shape):
        fan_in, fan_out = shape[0], shape[1]
        scale = jnp.sqrt(6.0 / (fan_in + fan_out))
        return jax.random.uniform(k, shape, jnp.float32, -scale, scale)

    return {
        "w1": glorot(k1, (in_channels, hidden_channels)),
        "b1": jnp.zeros((1, hidden_channels), jnp.float32),
        "w2": glorot(k2, (hidden_channels, hidden_channels)),
        "b2": jnp.zeros((1, hidden_channels), jnp.float32),
        "wl": glorot(k3, (hidden_channels, 1)),
        "bl": jnp.zeros((1, 1), jnp.float32),
    }


if __name__ == "__main__":
    IN_CHANNELS = 128
    HIDDEN = 64
    N_NODES = 16          # 2 graphs x 8 nodes
    NUM_GRAPHS = 2

    key = jax.random.PRNGKey(0)
    kx, kp = jax.random.split(key)

    x = jax.random.normal(kx, (N_NODES, IN_CHANNELS), jnp.float32)

    # Deterministic graph: two disjoint bidirectional rings of 8 nodes each.
    edges = []
    for g in range(NUM_GRAPHS):
        base = g * 8
        for i in range(8):
            a, b = base + i, base + (i + 1) % 8
            edges.append((a, b))
            edges.append((b, a))
    edge_index = jnp.array(edges, dtype=jnp.int32).T          # [2, E]
    batch = jnp.array([0] * 8 + [1] * 8, dtype=jnp.int32)     # [N]

    params = init_params(kp, IN_CHANNELS, HIDDEN)

    ref = _reference_forward(x, edge_index, batch, params, NUM_GRAPHS)

    # Path 1: fully fused single-kernel path (auto-selected for this small graph).
    out_fused = dummy_gnn_forward(x, edge_index, batch, params, NUM_GRAPHS)
    jax.block_until_ready(out_fused)
    assert out_fused.shape == (NUM_GRAPHS, 1) and out_fused.dtype == jnp.float32
    np.testing.assert_allclose(np.asarray(out_fused), np.asarray(ref),
                               rtol=5e-2, atol=5e-2)   # bf16 MXU tolerance

    # Path 2: K-tiled + pool-fused path (used for large graphs) - exercised here too.
    out_tiled = dummy_gnn_forward(x, edge_index, batch, params, NUM_GRAPHS,
                                  force_tiled=True)
    jax.block_until_ready(out_tiled)
    np.testing.assert_allclose(np.asarray(out_tiled), np.asarray(ref),
                               rtol=5e-2, atol=5e-2)

    print("KERNEL_OK")
</pallas_src>

<mosaic_0001>
module attributes {stable_mosaic.version = 11 : i64} {
  func.func private @main(%arg0: i32) attributes {dimension_semantics = [#tpu.dimension_semantics<core_parallel>], iteration_bounds = array<i64: 2>, tpu.core_type = #tpu.core_type<sc_scalar_subcore>, window_params = []} {
    return
  }
}

module attributes {stable_mosaic.version = 11 : i64} {
  func.func private @main(%arg0: i32) attributes {dimension_semantics = [#tpu.dimension_semantics<core_parallel>], iteration_bounds = array<i64: 2>, tpu.core_type = #tpu.core_type<sc_scalar_subcore>, window_params = []} {
    return
  }
}

module attributes {stable_mosaic.version = 11 : i64} {
  func.func @_fused_small_kernel(%arg0: memref<128x128xbf16, #tpu.memory_space<vmem>>, %arg1: memref<128x128xbf16, #tpu.memory_space<vmem>>, %arg2: memref<1x128xf32, #tpu.memory_space<vmem>>, %arg3: memref<128x128xbf16, #tpu.memory_space<vmem>>, %arg4: memref<1x128xf32, #tpu.memory_space<vmem>>, %arg5: memref<8x128xbf16, #tpu.memory_space<vmem>>, %arg6: memref<8x128xf32, #tpu.memory_space<vmem>>) attributes {dimension_semantics = [], scalar_prefetch = 0 : i64, scratch_operands = 0 : i64, tpu.core_type = #tpu.core_type<tc>} {
    %c0 = arith.constant 0 : index
    %c0_0 = arith.constant 0 : index
    %0 = vector.load %arg0[%c0, %c0_0] : memref<128x128xbf16, #tpu.memory_space<vmem>>, vector<128x128xbf16>
    %c0_1 = arith.constant 0 : index
    %c0_2 = arith.constant 0 : index
    %1 = vector.load %arg1[%c0_1, %c0_2] : memref<128x128xbf16, #tpu.memory_space<vmem>>, vector<128x128xbf16>
    %cst = arith.constant dense<0.000000e+00> : vector<128x128xf32>
    %2 = tpu.matmul %0, %1, %cst {dimension_numbers = #tpu.dot_dimension_numbers<[1], [0], [0], [1], [0, 0, 1, 1], [], []>} : vector<128x128xbf16>, vector<128x128xbf16>, vector<128x128xf32> -> vector<128x128xf32>
    %c0_3 = arith.constant 0 : index
    %c0_4 = arith.constant 0 : index
    %3 = vector.load %arg2[%c0_3, %c0_4] : memref<1x128xf32, #tpu.memory_space<vmem>>, vector<1x128xf32>
    %4 = vector.broadcast %3 : vector<1x128xf32> to vector<128x128xf32>
    %5 = arith.addf %2, %4 : vector<128x128xf32>
    %cst_5 = arith.constant 0.000000e+00 : f32
    %6 = vector.broadcast %cst_5 : f32 to vector<128x128xf32>
    %7 = arith.maximumf %5, %6 : vector<128x128xf32>
    %8 = arith.truncf %7 : vector<128x128xf32> to vector<128x128xbf16>
    %c0_6 = arith.constant 0 : index
    %c0_7 = arith.constant 0 : index
    %9 = vector.load %arg3[%c0_6, %c0_7] : memref<128x128xbf16, #tpu.memory_space<vmem>>, vector<128x128xbf16>
    %cst_8 = arith.constant dense<0.000000e+00> : vector<128x128xf32>
    %10 = tpu.matmul %8, %9, %cst_8 {dimension_numbers = #tpu.dot_dimension_numbers<[1], [0], [0], [1], [0, 0, 1, 1], [], []>} : vector<128x128xbf16>, vector<128x128xbf16>, vector<128x128xf32> -> vector<128x128xf32>
    %c0_9 = arith.constant 0 : index
    %c0_10 = arith.constant 0 : index
    %11 = vector.load %arg0[%c0_9, %c0_10] : memref<128x128xbf16, #tpu.memory_space<vmem>>, vector<128x128xbf16>
    %12 = arith.truncf %10 : vector<128x128xf32> to vector<128x128xbf16>
    %cst_11 = arith.constant dense<0.000000e+00> : vector<128x128xf32>
    %13 = tpu.matmul %11, %12, %cst_11 {dimension_numbers = #tpu.dot_dimension_numbers<[1], [0], [0], [1], [0, 0, 1, 1], [], []>} : vector<128x128xbf16>, vector<128x128xbf16>, vector<128x128xf32> -> vector<128x128xf32>
    %c0_12 = arith.constant 0 : index
    %c0_13 = arith.constant 0 : index
    %14 = vector.load %arg4[%c0_12, %c0_13] : memref<1x128xf32, #tpu.memory_space<vmem>>, vector<1x128xf32>
    %15 = vector.broadcast %14 : vector<1x128xf32> to vector<128x128xf32>
    %16 = arith.addf %13, %15 : vector<128x128xf32>
    %cst_14 = arith.constant 0.000000e+00 : f32
    %17 = vector.broadcast %cst_14 : f32 to vector<128x128xf32>
    %18 = arith.maximumf %16, %17 : vector<128x128xf32>
    %c0_15 = arith.constant 0 : index
    %c0_16 = arith.constant 0 : index
    %19 = vector.load %arg5[%c0_15, %c0_16] : memref<8x128xbf16, #tpu.memory_space<vmem>>, vector<8x128xbf16>
    %20 = arith.truncf %18 : vector<128x128xf32> to vector<128x128xbf16>
    %cst_17 = arith.constant dense<0.000000e+00> : vector<8x128xf32>
    %21 = tpu.matmul %19, %20, %cst_17 {dimension_numbers = #tpu.dot_dimension_numbers<[1], [0], [0], [1], [0, 0, 1, 1], [], []>} : vector<8x128xbf16>, vector<128x128xbf16>, vector<8x128xf32> -> vector<8x128xf32>
    %c0_18 = arith.constant 0 : index
    %c0_19 = arith.constant 0 : index
    %22 = vector.load %arg6[%c0_18, %c0_19] : memref<8x128xf32, #tpu.memory_space<vmem>>, vector<8x128xf32>
    tpu.vector_store %arg6[%c0_18, %c0_19], %21 {strides = array<i32>} : memref<8x128xf32, #tpu.memory_space<vmem>>, vector<8x128xf32>,
    return
  }
}

</mosaic_0001>

<llo_original>
// kernel: dummy_gnn_forward.1
$region0: #{dummy_gnn_forward.1}
  #allocation0 [shape = 'u32[]', space=smem, size = 0x4, offset = 0x4, fixed_abs, tag = 'smem constant byte address 0x4 - core index']
  #allocation1 [shape = 'u32[144,128]{1,0:T(1,128)}', space=vmem, size = 0x12000, scoped, tag = 'internal scratch']
  %s0 = inlined_call_operand.vmem [shape: bf16[128,128], index: 0, kind: input, shape index: {}]
  %s1 = inlined_call_operand.vmem [shape: bf16[128,128], index: 1, kind: input, shape index: {}]
  %s2 = inlined_call_operand.vmem [shape: f32[1,128], index: 2, kind: input, shape index: {}]
  %s3 = inlined_call_operand.vmem [shape: bf16[128,128], index: 3, kind: input, shape index: {}]
  %s4 = inlined_call_operand.vmem [shape: f32[1,128], index: 4, kind: input, shape index: {}]
  %s5 = inlined_call_operand.vmem [shape: bf16[8,128], index: 5, kind: input, shape index: {}]
  %s6 = inlined_call_operand.vmem [shape: f32[8,128], index: 6, kind: output, shape index: {}]
  %s7 = sld [smem:[#allocation0]]
  $region34: #{dummy_gnn_forward.1} parent=0
    _
  %s9 = ssub.s32 1, %s7
  %s10 = scalar_select 0, %s9, %s7
  // Predicated region
  $region2: #{dummy_gnn_forward.1} parent=0 // pred_check
    _
  $region3: #{dummy_gnn_forward.1} parent=0 // pred_check_branch
    %12 = sbr.rel (0) target = $region5
  $region4: #{dummy_gnn_forward.1} parent=0 // pred_region
    _
  $region5: #{dummy_gnn_forward.1} parent=0 // pred_fallthru
    _
  // Predicated region
  $region6: #{dummy_gnn_forward.1} parent=0 // pred_check
    _
  $region7: #{dummy_gnn_forward.1} parent=0 // pred_check_branch
    %14 = sbr.rel (0) target = $region9
  $region8: #{dummy_gnn_forward.1} parent=0 // pred_region
    _
  $region9: #{dummy_gnn_forward.1} parent=0 // pred_fallthru
    _
  // Predicated region
  $region10: #{dummy_gnn_forward.1} parent=0 // pred_check
    _
  $region11: #{dummy_gnn_forward.1} parent=0 // pred_check_branch
    %16 = sbr.rel (0) target = $region13
  $region12: #{dummy_gnn_forward.1} parent=0 // pred_region
    _
  $region13: #{dummy_gnn_forward.1} parent=0 // pred_fallthru
    _
  // Predicated region
  $region14: #{dummy_gnn_forward.1} parent=0 // pred_check
    _
  $region15: #{dummy_gnn_forward.1} parent=0 // pred_check_branch
    %18 = sbr.rel (0) target = $region17
  $region16: #{dummy_gnn_forward.1} parent=0 // pred_region
    _
  $region17: #{dummy_gnn_forward.1} parent=0 // pred_fallthru
    _
  // Predicated region
  $region18: #{dummy_gnn_forward.1} parent=0 // pred_check
    _
  $region19: #{dummy_gnn_forward.1} parent=0 // pred_check_branch
    %20 = sbr.rel (0) target = $region21
  $region20: #{dummy_gnn_forward.1} parent=0 // pred_region
    _
  $region21: #{dummy_gnn_forward.1} parent=0 // pred_fallthru
    _
  // Predicated region
  $region22: #{dummy_gnn_forward.1} parent=0 // pred_check
    _
  $region23: #{dummy_gnn_forward.1} parent=0 // pred_check_branch
    %22 = sbr.rel (0) target = $region25
  $region24: #{dummy_gnn_forward.1} parent=0 // pred_region
    _
  $region25: #{dummy_gnn_forward.1} parent=0 // pred_fallthru
    _
  %v24 = vld [vmem:[%s0] sm:$0xf]
  %v25 = vld [vmem:[%s0 + $0x4] sm:$0xf]
  %v26 = vld [vmem:[%s0 + $0x8] sm:$0xf]
  %v27 = vld [vmem:[%s0 + $0xc] sm:$0xf]
  %v28 = vld [vmem:[%s0 + $0x10] sm:$0xf]
  %v29 = vld [vmem:[%s0 + $0x14] sm:$0xf]
  %v30 = vld [vmem:[%s0 + $0x18] sm:$0xf]
  %v31 = vld [vmem:[%s0 + $0x1c] sm:$0xf]
  %v32 = vld [vmem:[%s0 + $0x20] sm:$0xf]
  %v33 = vld [vmem:[%s0 + $0x24] sm:$0xf]
  %v34 = vld [vmem:[%s0 + $0x28] sm:$0xf]
  %v35 = vld [vmem:[%s0 + $0x2c] sm:$0xf]
  %v36 = vld [vmem:[%s0 + $0x30] sm:$0xf]
  %v37 = vld [vmem:[%s0 + $0x34] sm:$0xf]
  %v38 = vld [vmem:[%s0 + $0x38] sm:$0xf]
  %v39 = vld [vmem:[%s0 + $0x3c] sm:$0xf]
  %v40 = vld [vmem:[%s1] sm:$0xf]
  %v41 = vld [vmem:[%s1 + $0x4] sm:$0xf]
  %v42 = vld [vmem:[%s1 + $0x8] sm:$0xf]
  %v43 = vld [vmem:[%s1 + $0xc] sm:$0xf]
  %v44 = vld [vmem:[%s1 + $0x10] sm:$0xf]
  %v45 = vld [vmem:[%s1 + $0x14] sm:$0xf]
  %v46 = vld [vmem:[%s1 + $0x18] sm:$0xf]
  %v47 = vld [vmem:[%s1 + $0x1c] sm:$0xf]
  %v48 = vld [vmem:[%s1 + $0x20] sm:$0xf]
  %v49 = vld [vmem:[%s1 + $0x24] sm:$0xf]
  %v50 = vld [vmem:[%s1 + $0x28] sm:$0xf]
  %v51 = vld [vmem:[%s1 + $0x2c] sm:$0xf]
  %v52 = vld [vmem:[%s1 + $0x30] sm:$0xf]
  %v53 = vld [vmem:[%s1 + $0x34] sm:$0xf]
  %v54 = vld [vmem:[%s1 + $0x38] sm:$0xf]
  %v55 = vld [vmem:[%s1 + $0x3c] sm:$0xf]
  %v56 = vld [vmem:[%s2] sm:$0x1]
  %v58 = vlaneseq
  %v59 = vshrl.u32 %v58, 7
  %v60 = vsub.s32 0, %v59
  %v61 = vrot.slane %v56, %v60
  %v79 = vunpack.c.l.b16 %v24
  %v80 = vunpack.c.l.b16 %v25
  %v81 = vunpack.c.l.b16 %v26
  %v82 = vunpack.c.l.b16 %v27
  %v83 = vunpack.c.l.b16 %v28
  %v84 = vunpack.c.l.b16 %v29
  %v85 = vunpack.c.l.b16 %v30
  %v86 = vunpack.c.l.b16 %v31
  %v87 = vunpack.c.l.b16 %v32
  %v88 = vunpack.c.l.b16 %v33
  %v89 = vunpack.c.l.b16 %v34
  %v90 = vunpack.c.l.b16 %v35
  %v91 = vunpack.c.l.b16 %v36
  %v92 = vunpack.c.l.b16 %v37
  %v93 = vunpack.c.l.b16 %v38
  %v94 = vunpack.c.l.b16 %v39
  %v95 = vpack.c.b16 %v80, %v79
  %v96 = vpack.c.b16 %v82, %v81
  %v97 = vpack.c.b16 %v84, %v83
  %v98 = vpack.c.b16 %v86, %v85
  %v99 = vpack.c.b16 %v88, %v87
  %v100 = vpack.c.b16 %v90, %v89
  %v101 = vpack.c.b16 %v92, %v91
  %v102 = vpack.c.b16 %v94, %v93
  %v127 = vunpack.c.l.b16 %v40
  %v128 = vunpack.c.l.b16 %v41
  %v129 = vunpack.c.l.b16 %v42
  %v130 = vunpack.c.l.b16 %v43
  %v131 = vunpack.c.l.b16 %v44
  %v132 = vunpack.c.l.b16 %v45
  %v133 = vunpack.c.l.b16 %v46
  %v134 = vunpack.c.l.b16 %v47
  %v135 = vunpack.c.l.b16 %v48
  %v136 = vunpack.c.l.b16 %v49
  %v137 = vunpack.c.l.b16 %v50
  %v138 = vunpack.c.l.b16 %v51
  %v139 = vunpack.c.l.b16 %v52
  %v140 = vunpack.c.l.b16 %v53
  %v141 = vunpack.c.l.b16 %v54
  %v142 = vunpack.c.l.b16 %v55
  %v143 = vpack.c.b16 %v128, %v127
  %v144 = vpack.c.b16 %v130, %v129
  %v145 = vpack.c.b16 %v132, %v131
  %v146 = vpack.c.b16 %v134, %v133
  %v147 = vpack.c.b16 %v136, %v135
  %v148 = vpack.c.b16 %v138, %v137
  %v149 = vpack.c.b16 %v140, %v139
  %v150 = vpack.c.b16 %v142, %v141
  %159 = vmatprep.subr.bf16.mxu0 0
  %160 = vmatpush1.bf16.msra.mxu0 %v143
  %161 = vmatprep.subr.bf16.mxu0 0
  %162 = vmatpush1.bf16.msra.mxu0 %v144
  %163 = vmatprep.subr.bf16.mxu0 0
  %164 = vmatpush1.bf16.msra.mxu0 %v145
  %165 = vmatprep.subr.bf16.mxu0 0
  %166 = vmatpush1.bf16.msra.mxu0 %v146
  %167 = vmatprep.subr.bf16.mxu0 0
  %168 = vmatpush1.bf16.msra.mxu0 %v147
  %169 = vmatprep.subr.bf16.mxu0 0
  %170 = vmatpush1.bf16.msra.mxu0 %v148
  %171 = vmatprep.subr.bf16.mxu0 0
  %172 = vmatpush1.bf16.msra.mxu0 %v149
  %173 = vmatprep.subr.bf16.mxu0 0
  %174 = vmatpush1.bf16.msra.mxu0 %v150
  %175 = vmatprep.subr.bf16.mxu0 0
  %176 = vmatpush1.bf16.msra.mxu0 0
  %177 = vmatprep.subr.bf16.mxu0 0
  %178 = vmatpush1.bf16.msra.mxu0 0
  %179 = vmatprep.subr.bf16.mxu0 0
  %180 = vmatpush1.bf16.msra.mxu0 0
  %181 = vmatprep.subr.bf16.mxu0 0
  %182 = vmatpush1.bf16.msra.mxu0 0
  %183 = vmatprep.subr.bf16.mxu0 0
  %184 = vmatpush1.bf16.msra.mxu0 0
  %185 = vmatprep.subr.bf16.mxu0 0
  %186 = vmatpush1.bf16.msra.mxu0 0
  %187 = vmatprep.subr.bf16.mxu0 0
  %188 = vmatpush1.bf16.msra.mxu0 0
  %189 = vmatprep.subr.bf16.mxu0 0
  %190 = vmatpush1.bf16.msra.mxu0 0
  %191 = vmatprep.mubr.bf16.mxu0 0
  %192 = vmatmul.mubr.bf16.gmra.mrb[0].mxu0 %v95
  %v193 = vpop.f32.mrb[0].mxu0
  %v194 = vadd.f32 %v61, %v193
  %v195 = vpop.f32.mrb[0].mxu0
  %v196 = vpop.f32.mrb[0].mxu0
  %v197 = vadd.f32 %v61, %v196
  %v198 = vpop.f32.mrb[0].mxu0
  %199 = vmatprep.mubr.bf16.mxu0 0
  %200 = vmatmul.mubr.bf16.gmra.mrb[0].mxu0 %v96
  %v201 = vpop.f32.mrb[0].mxu0
  %v202 = vadd.f32 %v61, %v201
  %v203 = vpop.f32.mrb[0].mxu0
  %v204 = vpop.f32.mrb[0].mxu0
  %v205 = vadd.f32 %v61, %v204
  %v206 = vpop.f32.mrb[0].mxu0
  %207 = vmatprep.mubr.bf16.mxu0 0
  %208 = vmatmul.mubr.bf16.gmra.mrb[0].mxu0 %v97
  %v209 = vpop.f32.mrb[0].mxu0
  %v210 = vadd.f32 %v61, %v209
  %v211 = vpop.f32.mrb[0].mxu0
  %v212 = vpop.f32.mrb[0].mxu0
  %v213 = vadd.f32 %v61, %v212
  %v214 = vpop.f32.mrb[0].mxu0
  %215 = vmatprep.mubr.bf16.mxu0 0
  %216 = vmatmul.mubr.bf16.gmra.mrb[0].mxu0 %v98
  %v217 = vpop.f32.mrb[0].mxu0
  %v218 = vadd.f32 %v61, %v217
  %v219 = vpop.f32.mrb[0].mxu0
  %v220 = vpop.f32.mrb[0].mxu0
  %v221 = vadd.f32 %v61, %v220
  %v222 = vpop.f32.mrb[0].mxu0
  %223 = vmatprep.mubr.bf16.mxu0 0
  %224 = vmatmul.mubr.bf16.gmra.mrb[0].mxu0 %v99
  %v225 = vpop.f32.mrb[0].mxu0
  %v226 = vadd.f32 %v61, %v225
  %v227 = vpop.f32.mrb[0].mxu0
  %v228 = vpop.f32.mrb[0].mxu0
  %v229 = vadd.f32 %v61, %v228
  %v230 = vpop.f32.mrb[0].mxu0
  %231 = vmatprep.mubr.bf16.mxu0 0
  %232 = vmatmul.mubr.bf16.gmra.mrb[0].mxu0 %v100
  %v233 = vpop.f32.mrb[0].mxu0
  %v234 = vadd.f32 %v61, %v233
  %v235 = vpop.f32.mrb[0].mxu0
  %v236 = vpop.f32.mrb[0].mxu0
  %v237 = vadd.f32 %v61, %v236
  %v238 = vpop.f32.mrb[0].mxu0
  %239 = vmatprep.mubr.bf16.mxu0 0
  %240 = vmatmul.mubr.bf16.gmra.mrb[0].mxu0 %v101
  %v241 = vpop.f32.mrb[0].mxu0
  %v242 = vadd.f32 %v61, %v241
  %v243 = vpop.f32.mrb[0].mxu0
  %v244 = vpop.f32.mrb[0].mxu0
  %v245 = vadd.f32 %v61, %v244
  %v246 = vpop.f32.mrb[0].mxu0
  %247 = vmatprep.mubr.bf16.mxu0 0
  %248 = vmatmul.mubr.bf16.gmra.mrb[0].mxu0 %v102
  %v249 = vpop.f32.mrb[0].mxu0
  %v250 = vadd.f32 %v61, %v249
  %v251 = vpop.f32.mrb[0].mxu0
  %v252 = vpop.f32.mrb[0].mxu0
  %v253 = vadd.f32 %v61, %v252
  %v254 = vpop.f32.mrb[0].mxu0
  %255 = vdwg.mxu0
  %v256 = vmax.f32 %v194, 0.0
  %v257 = vmax.f32 %v197, 0.0
  %v258 = vmax.f32 %v202, 0.0
  %v259 = vmax.f32 %v205, 0.0
  %v260 = vmax.f32 %v210, 0.0
  %v261 = vmax.f32 %v213, 0.0
  %v262 = vmax.f32 %v218, 0.0
  %v263 = vmax.f32 %v221, 0.0
  %v264 = vmax.f32 %v226, 0.0
  %v265 = vmax.f32 %v229, 0.0
  %v266 = vmax.f32 %v234, 0.0
  %v267 = vmax.f32 %v237, 0.0
  %v268 = vmax.f32 %v242, 0.0
  %v269 = vmax.f32 %v245, 0.0
  %v270 = vmax.f32 %v250, 0.0
  %v271 = vmax.f32 %v253, 0.0
  %v272 = vpack.c.bf16 %v257, %v256
  %v273 = vpack.c.bf16 %v259, %v258
  %v274 = vpack.c.bf16 %v261, %v260
  %v275 = vpack.c.bf16 %v263, %v262
  %v276 = vpack.c.bf16 %v265, %v264
  %v277 = vpack.c.bf16 %v267, %v266
  %v278 = vpack.c.bf16 %v269, %v268
  %v279 = vpack.c.bf16 %v271, %v270
  %v280 = vld [vmem:[%s3] sm:$0xf]
  %v281 = vld [vmem:[%s3 + $0x4] sm:$0xf]
  %v282 = vld [vmem:[%s3 + $0x8] sm:$0xf]
  %v283 = vld [vmem:[%s3 + $0xc] sm:$0xf]
  %v284 = vld [vmem:[%s3 + $0x10] sm:$0xf]
  %v285 = vld [vmem:[%s3 + $0x14] sm:$0xf]
  %v286 = vld [vmem:[%s3 + $0x18] sm:$0xf]
  %v287 = vld [vmem:[%s3 + $0x1c] sm:$0xf]
  %v288 = vld [vmem:[%s3 + $0x20] sm:$0xf]
  %v289 = vld [vmem:[%s3 + $0x24] sm:$0xf]
  %v290 = vld [vmem:[%s3 + $0x28] sm:$0xf]
  %v291 = vld [vmem:[%s3 + $0x2c] sm:$0xf]
  %v292 = vld [vmem:[%s3 + $0x30] sm:$0xf]
  %v293 = vld [vmem:[%s3 + $0x34] sm:$0xf]
  %v294 = vld [vmem:[%s3 + $0x38] sm:$0xf]
  %v295 = vld [vmem:[%s3 + $0x3c] sm:$0xf]
  %v312 = vunpack.c.l.b16 %v280
  %v313 = vunpack.c.l.b16 %v281
  %v314 = vunpack.c.l.b16 %v282
  %v315 = vunpack.c.l.b16 %v283
  %v316 = vunpack.c.l.b16 %v284
  %v317 = vunpack.c.l.b16 %v285
  %v318 = vunpack.c.l.b16 %v286
  %v319 = vunpack.c.l.b16 %v287
  %v320 = vunpack.c.l.b16 %v288
  %v321 = vunpack.c.l.b16 %v289
  %v322 = vunpack.c.l.b16 %v290
  %v323 = vunpack.c.l.b16 %v291
  %v324 = vunpack.c.l.b16 %v292
  %v325 = vunpack.c.l.b16 %v293
  %v326 = vunpack.c.l.b16 %v294
  %v327 = vunpack.c.l.b16 %v295
  %v328 = vpack.c.b16 %v313, %v312
  %v329 = vpack.c.b16 %v315, %v314
  %v330 = vpack.c.b16 %v317, %v316
  %v331 = vpack.c.b16 %v319, %v318
  %v332 = vpack.c.b16 %v321, %v320
  %v333 = vpack.c.b16 %v323, %v322
  %v334 = vpack.c.b16 %v325, %v324
  %v335 = vpack.c.b16 %v327, %v326
  %344 = vmatprep.subr.bf16.mxu0 0
  %345 = vmatpush1.bf16.msra.mxu0 %v328
  %346 = vmatprep.subr.bf16.mxu0 0
  %347 = vmatpush1.bf16.msra.mxu0 %v329
  %348 = vmatprep.subr.bf16.mxu0 0
  %349 = vmatpush1.bf16.msra.mxu0 %v330
  %350 = vmatprep.subr.bf16.mxu0 0
  %351 = vmatpush1.bf16.msra.mxu0 %v331
  %352 = vmatprep.subr.bf16.mxu0 0
  %353 = vmatpush1.bf16.msra.mxu0 %v332
  %354 = vmatprep.subr.bf16.mxu0 0
  %355 = vmatpush1.bf16.msra.mxu0 %v333
  %356 = vmatprep.subr.bf16.mxu0 0
  %357 = vmatpush1.bf16.msra.mxu0 %v334
  %358 = vmatprep.subr.bf16.mxu0 0
  %359 = vmatpush1.bf16.msra.mxu0 %v335
  %360 = vmatprep.subr.bf16.mxu0 0
  %361 = vmatpush1.bf16.msra.mxu0 0
  %362 = vmatprep.subr.bf16.mxu0 0
  %363 = vmatpush1.bf16.msra.mxu0 0
  %364 = vmatprep.subr.bf16.mxu0 0
  %365 = vmatpush1.bf16.msra.mxu0 0
  %366 = vmatprep.subr.bf16.mxu0 0
  %367 = vmatpush1.bf16.msra.mxu0 0
  %368 = vmatprep.subr.bf16.mxu0 0
  %369 = vmatpush1.bf16.msra.mxu0 0
  %370 = vmatprep.subr.bf16.mxu0 0
  %371 = vmatpush1.bf16.msra.mxu0 0
  %372 = vmatprep.subr.bf16.mxu0 0
  %373 = vmatpush1.bf16.msra.mxu0 0
  %374 = vmatprep.subr.bf16.mxu0 0
  %375 = vmatpush1.bf16.msra.mxu0 0
  %376 = vmatprep.mubr.bf16.mxu0 0
  %377 = vmatmul.mubr.bf16.gmra.mrb[0].mxu0 %v272
  %v378 = vpop.f32.mrb[0].mxu0
  %v379 = vadd.f32 0.0, %v378
  %v380 = vpop.f32.mrb[0].mxu0
  %v381 = vpop.f32.mrb[0].mxu0
  %v382 = vadd.f32 0.0, %v381
  %v383 = vpop.f32.mrb[0].mxu0
  %384 = vmatprep.mubr.bf16.mxu0 0
  %385 = vmatmul.mubr.bf16.gmra.mrb[0].mxu0 %v273
  %v386 = vpop.f32.mrb[0].mxu0
  %v387 = vadd.f32 0.0, %v386
  %v388 = vpop.f32.mrb[0].mxu0
  %v389 = vpop.f32.mrb[0].mxu0
  %v390 = vadd.f32 0.0, %v389
  %v391 = vpop.f32.mrb[0].mxu0
  %392 = vmatprep.mubr.bf16.mxu0 0
  %393 = vmatmul.mubr.bf16.gmra.mrb[0].mxu0 %v274
  %v394 = vpop.f32.mrb[0].mxu0
  %v395 = vadd.f32 0.0, %v394
  %v396 = vpop.f32.mrb[0].mxu0
  %v397 = vpop.f32.mrb[0].mxu0
  %v398 = vadd.f32 0.0, %v397
  %v399 = vpop.f32.mrb[0].mxu0
  %400 = vmatprep.mubr.bf16.mxu0 0
  %401 = vmatmul.mubr.bf16.gmra.mrb[0].mxu0 %v275
  %v402 = vpop.f32.mrb[0].mxu0
  %v403 = vadd.f32 0.0, %v402
  %v404 = vpop.f32.mrb[0].mxu0
  %v405 = vpop.f32.mrb[0].mxu0
  %v406 = vadd.f32 0.0, %v405
  %v407 = vpop.f32.mrb[0].mxu0
  %408 = vmatprep.mubr.bf16.mxu0 0
  %409 = vmatmul.mubr.bf16.gmra.mrb[0].mxu0 %v276
  %v410 = vpop.f32.mrb[0].mxu0
  %v411 = vadd.f32 0.0, %v410
  %v412 = vpop.f32.mrb[0].mxu0
  %v413 = vpop.f32.mrb[0].mxu0
  %v414 = vadd.f32 0.0, %v413
  %v415 = vpop.f32.mrb[0].mxu0
  %416 = vmatprep.mubr.bf16.mxu0 0
  %417 = vmatmul.mubr.bf16.gmra.mrb[0].mxu0 %v277
  %v418 = vpop.f32.mrb[0].mxu0
  %v419 = vadd.f32 0.0, %v418
  %v420 = vpop.f32.mrb[0].mxu0
  %v421 = vpop.f32.mrb[0].mxu0
  %v422 = vadd.f32 0.0, %v421
  %v423 = vpop.f32.mrb[0].mxu0
  %424 = vmatprep.mubr.bf16.mxu0 0
  %425 = vmatmul.mubr.bf16.gmra.mrb[0].mxu0 %v278
  %v426 = vpop.f32.mrb[0].mxu0
  %v427 = vadd.f32 0.0, %v426
  %v428 = vpop.f32.mrb[0].mxu0
  %v429 = vpop.f32.mrb[0].mxu0
  %v430 = vadd.f32 0.0, %v429
  %v431 = vpop.f32.mrb[0].mxu0
  %432 = vmatprep.mubr.bf16.mxu0 0
  %433 = vmatmul.mubr.bf16.gmra.mrb[0].mxu0 %v279
  %v434 = vpop.f32.mrb[0].mxu0
  %v435 = vadd.f32 0.0, %v434
  %v436 = vpop.f32.mrb[0].mxu0
  %v437 = vpop.f32.mrb[0].mxu0
  %v438 = vadd.f32 0.0, %v437
  %v439 = vpop.f32.mrb[0].mxu0
  %440 = vdwg.mxu0
  %v441 = vpack.c.bf16 %v382, %v379
  %v442 = vpack.c.bf16 %v390, %v387
  %v443 = vpack.c.bf16 %v398, %v395
  %v444 = vpack.c.bf16 %v406, %v403
  %v445 = vpack.c.bf16 %v414, %v411
  %v446 = vpack.c.bf16 %v422, %v419
  %v447 = vpack.c.bf16 %v430, %v427
  %v448 = vpack.c.bf16 %v438, %v435
  %v449 = vld [vmem:[%s4] sm:$0x1]
  %v451 = vlaneseq
  %v452 = vshrl.u32 %v451, 7
  %v453 = vsub.s32 0, %v452
  %v454 = vrot.slane %v449, %v453
  %456 = vmatprep.subr.bf16.mxu0 0
  %457 = vmatpush1.bf16.msra.mxu0 %v441
  %458 = vmatprep.subr.bf16.mxu0 0
  %459 = vmatpush1.bf16.msra.mxu0 %v442
  %460 = vmatprep.subr.bf16.mxu0 0
  %461 = vmatpush1.bf16.msra.mxu0 %v443
  %462 = vmatprep.subr.bf16.mxu0 0
  %463 = vmatpush1.bf16.msra.mxu0 %v444
  %464 = vmatprep.subr.bf16.mxu0 0
  %465 = vmatpush1.bf16.msra.mxu0 %v445
  %466 = vmatprep.subr.bf16.mxu0 0
  %467 = vmatpush1.bf16.msra.mxu0 %v446
  %468 = vmatprep.subr.bf16.mxu0 0
  %469 = vmatpush1.bf16.msra.mxu0 %v447
  %470 = vmatprep.subr.bf16.mxu0 0
  %471 = vmatpush1.bf16.msra.mxu0 %v448
  %472 = vmatprep.subr.bf16.mxu0 0
  %473 = vmatpush1.bf16.msra.mxu0 0
  %474 = vmatprep.subr.bf16.mxu0 0
  %475 = vmatpush1.bf16.msra.mxu0 0
  %476 = vmatprep.subr.bf16.mxu0 0
  %477 = vmatpush1.bf16.msra.mxu0 0
  %478 = vmatprep.subr.bf16.mxu0 0
  %479 = vmatpush1.bf16.msra.mxu0 0
  %480 = vmatprep.subr.bf16.mxu0 0
  %481 = vmatpush1.bf16.msra.mxu0 0
  %482 = vmatprep.subr.bf16.mxu0 0
  %483 = vmatpush1.bf16.msra.mxu0 0
  %484 = vmatprep.subr.bf16.mxu0 0
  %485 = vmatpush1.bf16.msra.mxu0 0
  %486 = vmatprep.subr.bf16.mxu0 0
  %487 = vmatpush1.bf16.msra.mxu0 0
  %488 = vmatprep.mubr.bf16.mxu0 0
  %489 = vmatmul.mubr.bf16.gmra.mrb[0].mxu0 %v95
  %v490 = vpop.f32.mrb[0].mxu0
  %v491 = vadd.f32 %v454, %v490
  %v492 = vpop.f32.mrb[0].mxu0
  %v493 = vpop.f32.mrb[0].mxu0
  %v494 = vadd.f32 %v454, %v493
  %v495 = vpop.f32.mrb[0].mxu0
  %496 = vmatprep.mubr.bf16.mxu0 0
  %497 = vmatmul.mubr.bf16.gmra.mrb[0].mxu0 %v96
  %v498 = vpop.f32.mrb[0].mxu0
  %v499 = vadd.f32 %v454, %v498
  %v500 = vpop.f32.mrb[0].mxu0
  %v501 = vpop.f32.mrb[0].mxu0
  %v502 = vadd.f32 %v454, %v501
  %v503 = vpop.f32.mrb[0].mxu0
  %504 = vmatprep.mubr.bf16.mxu0 0
  %505 = vmatmul.mubr.bf16.gmra.mrb[0].mxu0 %v97
  %v506 = vpop.f32.mrb[0].mxu0
  %v507 = vadd.f32 %v454, %v506
  %v508 = vpop.f32.mrb[0].mxu0
  %v509 = vpop.f32.mrb[0].mxu0
  %v510 = vadd.f32 %v454, %v509
  %v511 = vpop.f32.mrb[0].mxu0
  %512 = vmatprep.mubr.bf16.mxu0 0
  %513 = vmatmul.mubr.bf16.gmra.mrb[0].mxu0 %v98
  %v514 = vpop.f32.mrb[0].mxu0
  %v515 = vadd.f32 %v454, %v514
  %v516 = vpop.f32.mrb[0].mxu0
  %v517 = vpop.f32.mrb[0].mxu0
  %v518 = vadd.f32 %v454, %v517
  %v519 = vpop.f32.mrb[0].mxu0
  %520 = vmatprep.mubr.bf16.mxu0 0
  %521 = vmatmul.mubr.bf16.gmra.mrb[0].mxu0 %v99
  %v522 = vpop.f32.mrb[0].mxu0
  %v523 = vadd.f32 %v454, %v522
  %v524 = vpop.f32.mrb[0].mxu0
  %v525 = vpop.f32.mrb[0].mxu0
  %v526 = vadd.f32 %v454, %v525
  %v527 = vpop.f32.mrb[0].mxu0
  %528 = vmatprep.mubr.bf16.mxu0 0
  %529 = vmatmul.mubr.bf16.gmra.mrb[0].mxu0 %v100
  %v530 = vpop.f32.mrb[0].mxu0
  %v531 = vadd.f32 %v454, %v530
  %v532 = vpop.f32.mrb[0].mxu0
  %v533 = vpop.f32.mrb[0].mxu0
  %v534 = vadd.f32 %v454, %v533
  %v535 = vpop.f32.mrb[0].mxu0
  %536 = vmatprep.mubr.bf16.mxu0 0
  %537 = vmatmul.mubr.bf16.gmra.mrb[0].mxu0 %v101
  %v538 = vpop.f32.mrb[0].mxu0
  %v539 = vadd.f32 %v454, %v538
  %v540 = vpop.f32.mrb[0].mxu0
  %v541 = vpop.f32.mrb[0].mxu0
  %v542 = vadd.f32 %v454, %v541
  %v543 = vpop.f32.mrb[0].mxu0
  %544 = vmatprep.mubr.bf16.mxu0 0
  %545 = vmatmul.mubr.bf16.gmra.mrb[0].mxu0 %v102
  %v546 = vpop.f32.mrb[0].mxu0
  %v547 = vadd.f32 %v454, %v546
  %v548 = vpop.f32.mrb[0].mxu0
  %v549 = vpop.f32.mrb[0].mxu0
  %v550 = vadd.f32 %v454, %v549
  %v551 = vpop.f32.mrb[0].mxu0
  %552 = vdwg.mxu0
  %v553 = vmax.f32 %v491, 0.0
  %v554 = vmax.f32 %v494, 0.0
  %v555 = vmax.f32 %v499, 0.0
  %v556 = vmax.f32 %v502, 0.0
  %v557 = vmax.f32 %v507, 0.0
  %v558 = vmax.f32 %v510, 0.0
  %v559 = vmax.f32 %v515, 0.0
  %v560 = vmax.f32 %v518, 0.0
  %v561 = vmax.f32 %v523, 0.0
  %v562 = vmax.f32 %v526, 0.0
  %v563 = vmax.f32 %v531, 0.0
  %v564 = vmax.f32 %v534, 0.0
  %v565 = vmax.f32 %v539, 0.0
  %v566 = vmax.f32 %v542, 0.0
  %v567 = vmax.f32 %v547, 0.0
  %v568 = vmax.f32 %v550, 0.0
  %v569 = vld [vmem:[%s5] sm:$0xf]
  %v570 = vpack.c.bf16 %v554, %v553
  %v571 = vpack.c.bf16 %v556, %v555
  %v572 = vpack.c.bf16 %v558, %v557
  %v573 = vpack.c.bf16 %v560, %v559
  %v574 = vpack.c.bf16 %v562, %v561
  %v575 = vpack.c.bf16 %v564, %v563
  %v576 = vpack.c.bf16 %v566, %v565
  %v577 = vpack.c.bf16 %v568, %v567
  %578 = vmatprep.subr.bf16.mxu0 0
  %579 = vmatpush1.bf16.msra.mxu0 %v570
  %580 = vmatprep.subr.bf16.mxu0 0
  %581 = vmatpush1.bf16.msra.mxu0 %v571
  %582 = vmatprep.subr.bf16.mxu0 0
  %583 = vmatpush1.bf16.msra.mxu0 %v572
  %584 = vmatprep.subr.bf16.mxu0 0
  %585 = vmatpush1.bf16.msra.mxu0 %v573
  %586 = vmatprep.subr.bf16.mxu0 0
  %587 = vmatpush1.bf16.msra.mxu0 %v574
  %588 = vmatprep.subr.bf16.mxu0 0
  %589 = vmatpush1.bf16.msra.mxu0 %v575
  %590 = vmatprep.subr.bf16.mxu0 0
  %591 = vmatpush1.bf16.msra.mxu0 %v576
  %592 = vmatprep.subr.bf16.mxu0 0
  %593 = vmatpush1.bf16.msra.mxu0 %v577
  %594 = vmatprep.subr.bf16.mxu0 0
  %595 = vmatpush1.bf16.msra.mxu0 0
  %596 = vmatprep.subr.bf16.mxu0 0
  %597 = vmatpush1.bf16.msra.mxu0 0
  %598 = vmatprep.subr.bf16.mxu0 0
  %599 = vmatpush1.bf16.msra.mxu0 0
  %600 = vmatprep.subr.bf16.mxu0 0
  %601 = vmatpush1.bf16.msra.mxu0 0
  %602 = vmatprep.subr.bf16.mxu0 0
  %603 = vmatpush1.bf16.msra.mxu0 0
  %604 = vmatprep.subr.bf16.mxu0 0
  %605 = vmatpush1.bf16.msra.mxu0 0
  %606 = vmatprep.subr.bf16.mxu0 0
  %607 = vmatpush1.bf16.msra.mxu0 0
  %608 = vmatprep.subr.bf16.mxu0 0
  %609 = vmatpush1.bf16.msra.mxu0 0
  %610 = vmatprep.mubr.bf16.mxu0 0
  %611 = vmatmul.mubr.bf16.gmra.mrb[0].mxu0 %v569
  %v612 = vpop.f32.mrb[0].mxu0
  %v613 = vadd.f32 0.0, %v612
  %v614 = vpop.f32.mrb[0].mxu0
  %v615 = vpop.f32.mrb[0].mxu0
  %v616 = vpop.f32.mrb[0].mxu0
  %617 = vdwg.mxu0
  %618 = vst [vmem:[%s6] sm:$0xff] %v613
  // Predicated region
  $region26: #{dummy_gnn_forward.1} parent=0 // pred_check
    _
  $region27: #{dummy_gnn_forward.1} parent=0 // pred_check_branch
    %620 = sbr.rel (0) target = $region29
  $region28: #{dummy_gnn_forward.1} parent=0 // pred_region
    _
  $region29: #{dummy_gnn_forward.1} parent=0 // pred_fallthru
    _
  // Predicated region
  $region30: #{dummy_gnn_forward.1} parent=0 // pred_check
    _
  $region31: #{dummy_gnn_forward.1} parent=0 // pred_check_branch
    %622 = sbr.rel (0) target = $region33
  $region32: #{dummy_gnn_forward.1} parent=0 // pred_region
    _
  $region33: #{dummy_gnn_forward.1} parent=0 // pred_fallthru
    _

</llo_original>
